<compile_context>
chip_gen: v7x
topology: tpu7x:2x2x1
jax: 0.10.0
libtpu: 0.0.40
codegen_flags: <defaults>
</compile_context>

<pallas_src>
import math
import jax
import jax.numpy as jnp
from jax import lax
from jax.experimental import pallas as pl
from jax.experimental.pallas import tpu as pltpu

_LN_EPS = 1e-12
_VMEM_LIMIT = 48 * 1024 * 1024   # conservative: below v7x's 64 MiB physical VMEM


def _pick_tile(dim, target, granule, need_exact):
    """Largest tile <= target that is a multiple of `granule`; prefers exact
    divisors of `dim`.  If need_exact (reduction dims) and no divisor exists,
    returns the whole dim (correct, possibly large)."""
    if dim <= target:
        return dim
    top = (target // granule) * granule
    for cand in range(top, granule - 1, -granule):
        if dim % cand == 0:
            return cand
    if need_exact:
        return dim            # whole reduction dim resident -> still correct
    return top                # ragged tile on a parallel dim is safe


# ---------------------------------------------------------------------------
# Tiled matmul: o = act(x @ w + b)
# ---------------------------------------------------------------------------
def linear_pallas(x, w, b, activation=None, tm=512, tn=512, tk=1024):
    M, K = x.shape
    N = w.shape[1]
    tm = _pick_tile(M, tm, 8, need_exact=False)
    tn = _pick_tile(N, tn, 128, need_exact=False)
    tk = _pick_tile(K, tk, 128, need_exact=True)   # must divide K exactly
    grid = (pl.cdiv(M, tm), pl.cdiv(N, tn), K // tk)

    def kernel(x_ref, w_ref, b_ref, o_ref, acc_ref):
        @pl.when(pl.program_id(2) == 0)
        def _():
            acc_ref[...] = jnp.zeros_like(acc_ref)

        acc_ref[...] += jnp.dot(x_ref[...], w_ref[...],
                                preferred_element_type=jnp.float32)

        @pl.when(pl.program_id(2) == pl.num_programs(2) - 1)
        def _():
            y = acc_ref[...] + b_ref[...].astype(jnp.float32)
            if activation == "relu":
                y = jnp.maximum(y, 0.0)
            elif activation == "gelu":
                # TODO(synk): HF BERT uses exact (erf) GELU; tanh approximation is
                # used here for a guaranteed Mosaic lowering (tiny numeric drift).
                y = jax.nn.gelu(y, approximate=True)
            o_ref[...] = y.astype(o_ref.dtype)

    return pl.pallas_call(
        kernel,
        out_shape=jax.ShapeDtypeStruct((M, N), x.dtype),
        grid_spec=pltpu.PrefetchScalarGridSpec(
            num_scalar_prefetch=0,
            grid=grid,
            in_specs=[
                pl.BlockSpec((tm, tk), lambda i, j, k: (i, k)),
                pl.BlockSpec((tk, tn), lambda i, j, k: (k, j)),
                pl.BlockSpec((1, tn), lambda i, j, k: (0, j)),
            ],
            out_specs=pl.BlockSpec((tm, tn), lambda i, j, k: (i, j)),
            scratch_shapes=[pltpu.VMEM((tm, tn), jnp.float32)]),
        compiler_params=pltpu.CompilerParams(
            dimension_semantics=("parallel", "parallel", "arbitrary"),
            vmem_limit_bytes=_VMEM_LIMIT),
    )(x, w, b.reshape(1, N))


# ---------------------------------------------------------------------------
# Tiled matmul with fused epilogue: o = LayerNorm(residual + x @ w + b)
# (LayerNorm over the whole hidden dim, so N is kept whole in the output block.)
# ---------------------------------------------------------------------------
def linear_residual_layernorm_pallas(x, w, b, residual, gamma, beta,
                                     tm=512, tk=1024):
    M, K = x.shape
    N = w.shape[1]
    tm = _pick_tile(M, tm, 8, need_exact=False)
    tk = _pick_tile(K, tk, 128, need_exact=True)   # K=768 -> single k step
    grid = (pl.cdiv(M, tm), K // tk)

    def kernel(x_ref, w_ref, b_ref, r_ref, g_ref, bt_ref, o_ref, acc_ref):
        @pl.when(pl.program_id(1) == 0)
        def _():
            acc_ref[...] = jnp.zeros_like(acc_ref)

        acc_ref[...] += jnp.dot(x_ref[...], w_ref[...],
                                preferred_element_type=jnp.float32)

        @pl.when(pl.program_id(1) == pl.num_programs(1) - 1)
        def _():
            y = (acc_ref[...] + b_ref[...].astype(jnp.float32)
                 + r_ref[...].astype(jnp.float32))
            mean = jnp.mean(y, axis=-1, keepdims=True)
            var = jnp.mean((y - mean) ** 2, axis=-1, keepdims=True)
            norm = (y - mean) * lax.rsqrt(var + _LN_EPS)
            o_ref[...] = (norm * g_ref[...].astype(jnp.float32)
                          + bt_ref[...].astype(jnp.float32)).astype(o_ref.dtype)

    return pl.pallas_call(
        kernel,
        out_shape=jax.ShapeDtypeStruct((M, N), x.dtype),
        grid_spec=pltpu.PrefetchScalarGridSpec(
            num_scalar_prefetch=0,
            grid=grid,
            in_specs=[
                pl.BlockSpec((tm, tk), lambda i, k: (i, k)),
                pl.BlockSpec((tk, N), lambda i, k: (k, 0)),
                pl.BlockSpec((1, N), lambda i, k: (0, 0)),
                pl.BlockSpec((tm, N), lambda i, k: (i, 0)),   # residual
                pl.BlockSpec((1, N), lambda i, k: (0, 0)),    # gamma
                pl.BlockSpec((1, N), lambda i, k: (0, 0)),    # beta
            ],
            out_specs=pl.BlockSpec((tm, N), lambda i, k: (i, 0)),
            scratch_shapes=[pltpu.VMEM((tm, N), jnp.float32)]),
        compiler_params=pltpu.CompilerParams(
            dimension_semantics=("parallel", "arbitrary"),
            vmem_limit_bytes=_VMEM_LIMIT),
    )(x, w, b.reshape(1, N), residual, gamma.reshape(1, N), beta.reshape(1, N))


# ---------------------------------------------------------------------------
# Fused embedding sum + LayerNorm:
#   o[b, s, :] = LayerNorm(word_emb[b,s] + pos_emb[s] + type_emb[b,s])
# ---------------------------------------------------------------------------
def embed_layernorm_pallas(we, pe, te, gamma, beta, ts=512):
    B, S, H = we.shape
    ts = _pick_tile(S, ts, 8, need_exact=False)
    grid = (B, pl.cdiv(S, ts))

    def kernel(we_ref, pe_ref, te_ref, g_ref, b_ref, o_ref):
        y = (we_ref[0].astype(jnp.float32) + pe_ref[...].astype(jnp.float32)
             + te_ref[0].astype(jnp.float32))
        mean = jnp.mean(y, axis=-1, keepdims=True)
        var = jnp.mean((y - mean) ** 2, axis=-1, keepdims=True)
        norm = (y - mean) * lax.rsqrt(var + _LN_EPS)
        o_ref[0] = (norm * g_ref[...].astype(jnp.float32)
                    + b_ref[...].astype(jnp.float32)).astype(o_ref.dtype)

    return pl.pallas_call(
        kernel,
        out_shape=jax.ShapeDtypeStruct((B, S, H), we.dtype),
        grid=grid,
        in_specs=[
            pl.BlockSpec((1, ts, H), lambda b, s: (b, s, 0)),
            pl.BlockSpec((ts, H), lambda b, s: (s, 0)),
            pl.BlockSpec((1, ts, H), lambda b, s: (b, s, 0)),
            pl.BlockSpec((1, H), lambda b, s: (0, 0)),
            pl.BlockSpec((1, H), lambda b, s: (0, 0)),
        ],
        out_specs=pl.BlockSpec((1, ts, H), lambda b, s: (b, s, 0)),
        compiler_params=pltpu.CompilerParams(
            dimension_semantics=("parallel", "parallel"),
            vmem_limit_bytes=_VMEM_LIMIT),
    )(we, pe, te, gamma.reshape(1, H), beta.reshape(1, H))


# ---------------------------------------------------------------------------
# Masked multi-head self-attention, grid over (batch, head group).
#   qkv:       [B, S, 3H] packed Q|K|V (same array passed 3x with different
#              index_maps when the head-group width is a multiple of 128 lanes)
#   mask_bias: [B, 1, S] additive f32 bias = (1 - mask) * -1e9, precomputed once
#   returns    [B, S, H]
# TODO(synk): for S >= 1024 a flash-style online-softmax KV tiling would bound
#             the (S,S) score scratch (matters for v7x's 64 MiB VMEM).
# ---------------------------------------------------------------------------
def attention_pallas(qkv, mask_bias, num_heads):
    B, S, H3 = qkv.shape
    H = H3 // 3
    dH = H // num_heads
    scale = 1.0 / math.sqrt(dH)

    # heads per grid block: smallest group whose lane width is a multiple of 128
    hpb = None
    if dH % 128 == 0:
        hpb = 1
    elif (128 % dH == 0 and (128 // dH) <= num_heads
          and num_heads % (128 // dH) == 0):
        hpb = 128 // dH
    if hpb is None:
        hpb = num_heads                     # tiny-model fallback (toy config)
    G = hpb * dH
    n_groups = num_heads // hpb
    aligned = (G % 128 == 0)

    if aligned:
        # blocks of width G carved directly out of the packed [.., 3H] array
        qkv_specs = [
            pl.BlockSpec((1, S, G), lambda b, g: (b, 0, g)),
            pl.BlockSpec((1, S, G), lambda b, g, _n=n_groups: (b, 0, _n + g)),
            pl.BlockSpec((1, S, G), lambda b, g, _n=n_groups: (b, 0, 2 * _n + g)),
        ]
        q_off, k_off, v_off = 0, 0, 0
    else:
        # full-width block, static Q/K/V offsets inside the kernel (n_groups == 1)
        qkv_specs = [pl.BlockSpec((1, S, H3), lambda b, g: (b, 0, 0))] * 3
        q_off, k_off, v_off = 0, H, 2 * H

    def kernel(q_ref, k_ref, v_ref, m_ref, o_ref):
        # mask-bias broadcast hoisted out of the head loop (JAX does not CSE it)
        bias = jnp.broadcast_to(m_ref[0].astype(jnp.float32), (S, S))
        ctxs = []
        for h in range(hpb):                     # static unroll, 1-2 heads/group
            qh = q_ref[0, :, pl.ds(q_off + h * dH, dH)]   # Ref slices, not value
            kh = k_ref[0, :, pl.ds(k_off + h * dH, dH)]
            vh = v_ref[0, :, pl.ds(v_off + h * dH, dH)]
            # contract last axes -> no explicit K transpose materialized
            s = lax.dot_general(qh, kh, (((1,), (1,)), ((), ())),
                                preferred_element_type=jnp.float32) * scale
            s = s + bias
            s = s - jnp.max(s, axis=-1, keepdims=True)
            p = jnp.exp(s)
            # TODO(synk): approximate EUP reciprocal (tiny drift vs exact divide).
            inv_l = pl.reciprocal(jnp.sum(p, axis=-1, keepdims=True), approx=True)
            ctxs.append(jnp.dot((p * inv_l).astype(vh.dtype), vh,
                                preferred_element_type=jnp.float32))
        ctx = ctxs[0] if hpb == 1 else jnp.concatenate(ctxs, axis=-1)
        o_ref[0] = ctx.astype(o_ref.dtype)       # single lane-dense (S, G) store

    return pl.pallas_call(
        kernel,
        out_shape=jax.ShapeDtypeStruct((B, S, H), qkv.dtype),
        grid=(B, n_groups),
        in_specs=qkv_specs + [pl.BlockSpec((1, 1, S), lambda b, g: (b, 0, 0))],
        out_specs=pl.BlockSpec((1, S, G), lambda b, g: (b, 0, g)),
        compiler_params=pltpu.CompilerParams(
            dimension_semantics=("parallel", "parallel"),
            vmem_limit_bytes=_VMEM_LIMIT),
    )(qkv, qkv, qkv, mask_bias)


# ---------------------------------------------------------------------------
# Fused pooler + classifier head: logits = relu(cls @ W1 + b1) @ W2p + b2p
# (W2/b2 are pre-padded to a 128-lane multiple at init time; f32 logits out.)
# ---------------------------------------------------------------------------
def classifier_head_pallas(cls_hidden, w1, b1, w2_pad, b2_pad):
    B, H = cls_hidden.shape
    NP = w2_pad.shape[1]

    def kernel(x_ref, w1_ref, b1_ref, w2_ref, b2_ref, o_ref):
        x = x_ref[...]
        # TODO(synk): nn.Dropout on cls_hidden is identity in eval mode.
        h1 = jnp.dot(x, w1_ref[...], preferred_element_type=jnp.float32)
        h1 = jnp.maximum(h1 + b1_ref[...].astype(jnp.float32), 0.0)
        o = jnp.dot(h1.astype(x.dtype), w2_ref[...],
                    preferred_element_type=jnp.float32)
        o_ref[...] = o + b2_ref[...].astype(jnp.float32)

    return pl.pallas_call(
        kernel,
        out_shape=jax.ShapeDtypeStruct((B, NP), jnp.float32),
        grid=(1,),
        in_specs=[
            pl.BlockSpec((B, H), lambda i: (0, 0)),
            pl.BlockSpec((H, H), lambda i: (0, 0)),
            pl.BlockSpec((1, H), lambda i: (0, 0)),
            pl.BlockSpec((H, NP), lambda i: (0, 0)),
            pl.BlockSpec((1, NP), lambda i: (0, 0)),
        ],
        out_specs=pl.BlockSpec((B, NP), lambda i: (0, 0)),
        compiler_params=pltpu.CompilerParams(vmem_limit_bytes=_VMEM_LIMIT),
    )(cls_hidden, w1, b1.reshape(1, H), w2_pad, b2_pad.reshape(1, NP))


# ---------------------------------------------------------------------------
# Synthetic BERT parameters (deterministic; stands in for pretrained checkpoint)
# ---------------------------------------------------------------------------
def init_params(key, cfg):
    H, I = cfg["hidden"], cfg["intermediate"]
    V, P, T = cfg["vocab"], cfg["max_pos"], cfg["type_vocab"]
    L, NL = cfg["layers"], cfg["num_labels"]
    dt = cfg["dtype"]
    keys = iter(jax.random.split(key, 8 + 6 * L))

    def w(shape):
        return (jax.random.normal(next(keys), shape, jnp.float32) * 0.02).astype(dt)

    NLp = pl.cdiv(NL, 128) * 128      # pad classifier head to 128 lanes ONCE
    out_w = w((H, NL))
    params = {
        "word_emb": w((V, H)),
        "pos_emb": w((P, H)),
        "type_emb": w((T, H)),
        "emb_ln_g": jnp.ones((H,), dt),
        "emb_ln_b": jnp.zeros((H,), dt),
        "layers": [],
        "cls_w": w((H, H)),
        "cls_b": jnp.zeros((H,), dt),
        "out_w_pad": jnp.pad(out_w, ((0, 0), (0, NLp - NL))),
        "out_b_pad": jnp.zeros((NLp,), dt),
    }
    for _ in range(L):
        params["layers"].append({
            # fused Q|K|V projection: one [H, 3H] matmul per layer
            "w_qkv": w((H, 3 * H)), "b_qkv": jnp.zeros((3 * H,), dt),
            "wo": w((H, H)), "bo": jnp.zeros((H,), dt),
            "ln1_g": jnp.ones((H,), dt), "ln1_b": jnp.zeros((H,), dt),
            "wi": w((H, I)), "bi": jnp.zeros((I,), dt),
            "wf": w((I, H)), "bf": jnp.zeros((H,), dt),
            "ln2_g": jnp.ones((H,), dt), "ln2_b": jnp.zeros((H,), dt),
        })
    return params


# ---------------------------------------------------------------------------
# Forward pass (mirrors bert_classifier.forward semantics)
# ---------------------------------------------------------------------------
def bert_classifier_forward(params, input_ids, attention_mask, token_type_ids, cfg):
    B, S = input_ids.shape
    H, nH = cfg["hidden"], cfg["heads"]

    # Embedding lookups are gathers: plain-JAX glue; sum + LN fused in one kernel.
    we = jnp.take(params["word_emb"], input_ids, axis=0)          # [B,S,H]
    te = jnp.take(params["type_emb"], token_type_ids, axis=0)     # [B,S,H]
    pe = params["pos_emb"][:S]                                    # [S,H]
    h = embed_layernorm_pallas(we, pe, te,
                               params["emb_ln_g"], params["emb_ln_b"])
    h = h.reshape(B * S, H)

    # Additive attention-mask bias, computed once (kept f32 for -1e9 range).
    mask_bias = ((1.0 - attention_mask.astype(jnp.float32)) * -1e9).reshape(B, 1, S)

    for lyr in params["layers"]:
        # Fused Q/K/V projection: one matmul, heads stay packed in the lane dim.
        qkv = linear_pallas(h, lyr["w_qkv"], lyr["b_qkv"]).reshape(B, S, 3 * H)
        ctx = attention_pallas(qkv, mask_bias, nH).reshape(B * S, H)
        # Attention output proj + bias + residual + LayerNorm, fused epilogue.
        h = linear_residual_layernorm_pallas(ctx, lyr["wo"], lyr["bo"], h,
                                             lyr["ln1_g"], lyr["ln1_b"])
        inter = linear_pallas(h, lyr["wi"], lyr["bi"], activation="gelu")
        # FFN output proj + bias + residual + LayerNorm, fused epilogue.
        h = linear_residual_layernorm_pallas(inter, lyr["wf"], lyr["bf"], h,
                                             lyr["ln2_g"], lyr["ln2_b"])

    cls_hidden = h.reshape(B, S, H)[:, 0]                         # [B, H]
    # Fused pooler-linear + ReLU + classifier head; f32 logits, slice padding off.
    logits = classifier_head_pallas(cls_hidden, params["cls_w"], params["cls_b"],
                                    params["out_w_pad"], params["out_b_pad"])
    return logits[:, :cfg["num_labels"]]                          # [B, num_labels] f32


# ---------------------------------------------------------------------------
if __name__ == "__main__":
    cfg = dict(hidden=32, heads=2, intermediate=64, layers=2,
               vocab=64, max_pos=16, type_vocab=2, num_labels=3,
               dtype=jnp.bfloat16)
    B, S = 2, 8

    root = jax.random.PRNGKey(0)
    k_param, k_ids, k_type = jax.random.split(root, 3)

    params = init_params(k_param, cfg)

    input_ids = jax.random.randint(k_ids, (B, S), 0, cfg["vocab"], dtype=jnp.int32)
    attention_mask = jnp.ones((B, S), jnp.int32).at[1, S - 2:].set(0)   # some padding
    token_type_ids = jax.random.randint(k_type, (B, S), 0, cfg["type_vocab"],
                                        dtype=jnp.int32)

    logits = bert_classifier_forward(params, input_ids, attention_mask,
                                     token_type_ids, cfg)
    jax.block_until_ready(logits)
    assert logits.shape == (B, cfg["num_labels"])
    assert logits.dtype == jnp.float32
    assert bool(jnp.all(jnp.isfinite(logits)))
    print("KERNEL_OK")
</pallas_src>

<mosaic_0001>
module attributes {stable_mosaic.version = 11 : i64} {
  func.func @kernel(%arg0: i32, %arg1: i32, %arg2: memref<1x8x32xbf16, #tpu.memory_space<vmem>>, %arg3: memref<8x32xbf16, #tpu.memory_space<vmem>>, %arg4: memref<1x8x32xbf16, #tpu.memory_space<vmem>>, %arg5: memref<1x32xbf16, #tpu.memory_space<vmem>>, %arg6: memref<1x32xbf16, #tpu.memory_space<vmem>>, %arg7: memref<1x8x32xbf16, #tpu.memory_space<vmem>>) attributes {dimension_semantics = [#tpu.dimension_semantics<parallel>, #tpu.dimension_semantics<parallel>], iteration_bounds = array<i64: 2, 1>, scalar_prefetch = 0 : i64, scratch_operands = 0 : i64, tpu.core_type = #tpu.core_type<tc>, window_params = [{transform_indices = @transform_0, window_bounds = array<i64: 1, 8, 32>}, {transform_indices = @transform_1, window_bounds = array<i64: 8, 32>}, {transform_indices = @transform_2, window_bounds = array<i64: 1, 8, 32>}, {pipeline_mode = #tpu.pipeline_mode<synchronous>, transform_indices = @transform_3, window_bounds = array<i64: 1, 32>}, {pipeline_mode = #tpu.pipeline_mode<synchronous>, transform_indices = @transform_4, window_bounds = array<i64: 1, 32>}, {transform_indices = @transform_5, window_bounds = array<i64: 1, 8, 32>}]} {
    %c0 = arith.constant 0 : index
    %c0_0 = arith.constant 0 : index
    %c0_1 = arith.constant 0 : index
    %0 = vector.load %arg2[%c0, %c0_0, %c0_1] : memref<1x8x32xbf16, #tpu.memory_space<vmem>>, vector<1x8x32xbf16>
    %1 = vector.shape_cast %0 : vector<1x8x32xbf16> to vector<8x32xbf16>
    %2 = arith.extf %1 : vector<8x32xbf16> to vector<8x32xf32>
    %c0_2 = arith.constant 0 : index
    %c0_3 = arith.constant 0 : index
    %3 = vector.load %arg3[%c0_2, %c0_3] : memref<8x32xbf16, #tpu.memory_space<vmem>>, vector<8x32xbf16>
    %4 = arith.extf %3 : vector<8x32xbf16> to vector<8x32xf32>
    %5 = arith.addf %2, %4 : vector<8x32xf32>
    %c0_4 = arith.constant 0 : index
    %c0_5 = arith.constant 0 : index
    %c0_6 = arith.constant 0 : index
    %6 = vector.load %arg4[%c0_4, %c0_5, %c0_6] : memref<1x8x32xbf16, #tpu.memory_space<vmem>>, vector<1x8x32xbf16>
    %7 = vector.shape_cast %6 : vector<1x8x32xbf16> to vector<8x32xbf16>
    %8 = arith.extf %7 : vector<8x32xbf16> to vector<8x32xf32>
    %9 = arith.addf %5, %8 : vector<8x32xf32>
    %cst = arith.constant dense<0.000000e+00> : vector<8xf32>
    %10 = vector.multi_reduction <add>, %9, %cst [1] : vector<8x32xf32> to vector<8xf32>
    %11 = vector.shape_cast %10 : vector<8xf32> to vector<8x1xf32>
    %cst_7 = arith.constant 3.200000e+01 : f32
    %12 = vector.broadcast %cst_7 : f32 to vector<8x1xf32>
    %13 = arith.divf %11, %12 : vector<8x1xf32>
    %14 = vector.broadcast %13 : vector<8x1xf32> to vector<8x32xf32>
    %15 = arith.subf %9, %14 : vector<8x32xf32>
    %16 = arith.mulf %15, %15 : vector<8x32xf32>
    %cst_8 = arith.constant dense<0.000000e+00> : vector<8xf32>
    %17 = vector.multi_reduction <add>, %16, %cst_8 [1] : vector<8x32xf32> to vector<8xf32>
    %18 = vector.shape_cast %17 : vector<8xf32> to vector<8x1xf32>
    %cst_9 = arith.constant 3.200000e+01 : f32
    %19 = vector.broadcast %cst_9 : f32 to vector<8x1xf32>
    %20 = arith.divf %18, %19 : vector<8x1xf32>
    %21 = vector.broadcast %13 : vector<8x1xf32> to vector<8x32xf32>
    %22 = arith.subf %9, %21 : vector<8x32xf32>
    %cst_10 = arith.constant 9.99999996E-13 : f32
    %23 = vector.broadcast %cst_10 : f32 to vector<8x1xf32>
    %24 = arith.addf %20, %23 : vector<8x1xf32>
    %25 = math.rsqrt %24 : vector<8x1xf32>
    %26 = vector.broadcast %25 : vector<8x1xf32> to vector<8x32xf32>
    %27 = arith.mulf %22, %26 : vector<8x32xf32>
    %c0_11 = arith.constant 0 : index
    %c0_12 = arith.constant 0 : index
    %28 = vector.load %arg5[%c0_11, %c0_12] : memref<1x32xbf16, #tpu.memory_space<vmem>>, vector<1x32xbf16>
    %29 = arith.extf %28 : vector<1x32xbf16> to vector<1x32xf32>
    %30 = vector.broadcast %29 : vector<1x32xf32> to vector<8x32xf32>
    %31 = arith.mulf %27, %30 : vector<8x32xf32>
    %c0_13 = arith.constant 0 : index
    %c0_14 = arith.constant 0 : index
    %32 = vector.load %arg6[%c0_13, %c0_14] : memref<1x32xbf16, #tpu.memory_space<vmem>>, vector<1x32xbf16>
    %33 = arith.extf %32 : vector<1x32xbf16> to vector<1x32xf32>
    %34 = vector.broadcast %33 : vector<1x32xf32> to vector<8x32xf32>
    %35 = arith.addf %31, %34 : vector<8x32xf32>
    %36 = arith.truncf %35 : vector<8x32xf32> to vector<8x32xbf16>
    %c0_15 = arith.constant 0 : index
    %c0_16 = arith.constant 0 : index
    %c0_17 = arith.constant 0 : index
    %37 = vector.load %arg7[%c0_15, %c0_16, %c0_17] : memref<1x8x32xbf16, #tpu.memory_space<vmem>>, vector<1x8x32xbf16>
    %38 = vector.shape_cast %37 : vector<1x8x32xbf16> to vector<8x32xbf16>
    %39 = vector.shape_cast %36 : vector<8x32xbf16> to vector<1x8x32xbf16>
    tpu.vector_store %arg7[%c0_15, %c0_16, %c0_17], %39 {strides = array<i32>} : memref<1x8x32xbf16, #tpu.memory_space<vmem>>, vector<1x8x32xbf16>,
    return
  }
  func.func @transform_0(%arg0: i32, %arg1: i32) -> (i32, i32, i32) {
    %c0_i32 = arith.constant 0 : i32
    %c0_i32_0 = arith.constant 0 : i32
    return %arg0, %arg1, %c0_i32 : i32, i32, i32
  }
  func.func @transform_1(%arg0: i32, %arg1: i32) -> (i32, i32) {
    %c0_i32 = arith.constant 0 : i32
    %c0_i32_0 = arith.constant 0 : i32
    return %arg1, %c0_i32 : i32, i32
  }
  func.func @transform_2(%arg0: i32, %arg1: i32) -> (i32, i32, i32) {
    %c0_i32 = arith.constant 0 : i32
    %c0_i32_0 = arith.constant 0 : i32
    return %arg0, %arg1, %c0_i32 : i32, i32, i32
  }
  func.func @transform_3(%arg0: i32, %arg1: i32) -> (i32, i32) {
    %c0_i32 = arith.constant 0 : i32
    %c0_i32_0 = arith.constant 0 : i32
    %c0_i32_1 = arith.constant 0 : i32
    return %c0_i32, %c0_i32_0 : i32, i32
  }
  func.func @transform_4(%arg0: i32, %arg1: i32) -> (i32, i32) {
    %c0_i32 = arith.constant 0 : i32
    %c0_i32_0 = arith.constant 0 : i32
    %c0_i32_1 = arith.constant 0 : i32
    return %c0_i32, %c0_i32_0 : i32, i32
  }
  func.func @transform_5(%arg0: i32, %arg1: i32) -> (i32, i32, i32) {
    %c0_i32 = arith.constant 0 : i32
    %c0_i32_0 = arith.constant 0 : i32
    return %arg0, %arg1, %c0_i32 : i32, i32, i32
  }
}

</mosaic_0001>

<llo_original>
// kernel: tpu_custom_call.1
$region0: #{tpu_custom_call.1}
  #allocation0 [shape = 'u32[]', space=smem, size = 0x4, offset = 0x4, fixed_abs, tag = 'smem constant byte address 0x4 - core index']
  #allocation1 [shape = 'u32[144,128]{1,0:T(1,128)}', space=vmem, size = 0x12000, scoped, tag = 'internal scratch']
  %s0 = inlined_call_operand.hbm [shape: bf16[2,8,32], index: 0, kind: input, shape index: {}]
  %s1 = inlined_call_operand.hbm [shape: bf16[8,32], index: 1, kind: input, shape index: {}]
  %s2 = inlined_call_operand.hbm [shape: bf16[2,8,32], index: 2, kind: input, shape index: {}]
  %s3 = inlined_call_operand.vmem [shape: bf16[1,32], index: 3, kind: input, shape index: {}]
  %s4 = inlined_call_operand.vmem [shape: bf16[1,32], index: 4, kind: input, shape index: {}]
  %s5 = inlined_call_operand.hbm [shape: bf16[2,8,32], index: 5, kind: output, shape index: {}]
  %s6 = sld [smem:[#allocation0]]
  $region65: #{tpu_custom_call.1} parent=0
    _
  %s8 = ssub.s32 1, %s6
  %s9 = scalar_select 0, %s8, %s6
  $region1: #{tpu_custom_call.1} parent=0
    #allocation2 [shape = 'u8[4096]{0}', space=vmem, size = 0x1000, scoped, tag = 'input window, operand 0']
    #allocation3 [shape = 's32[2]{0}', space=sflag, size = 0x8, scoped, tag = 'scoped memory for tpu_custom_call.1']
    #allocation4 [shape = 's32[2]{0}', space=sflag, size = 0x8, scoped, tag = 'scoped memory for tpu_custom_call.1']
    #allocation5 [shape = 'u8[2048]{0}', space=vmem, size = 0x800, scoped, tag = 'input window, operand 1, single buffered']
    #allocation6 [shape = 's32[1]{0}', space=sflag, size = 0x4, scoped, tag = 'scoped memory for tpu_custom_call.1']
    #allocation7 [shape = 'u8[4096]{0}', space=vmem, size = 0x1000, scoped, tag = 'input window, operand 2']
    #allocation8 [shape = 'u8[4096]{0}', space=vmem, size = 0x1000, scoped, tag = 'output window, operand 0']
    %10 = vsyncpa [#allocation3], 0
    %s11 = scalar_lea.sflag [#allocation3], 1
    %12 = vsyncpa %s11, 0
    %13 = vsyncpa [#allocation6], 0
    %14 = vsyncpa [#allocation4], 0
    %s15 = scalar_lea.sflag [#allocation4], 1
    %16 = vsyncpa %s15, 0
    loop: start=0, step=1, limit=4
    $region2: #{tpu_custom_call.1} parent=1 // loop_pre_header
      _
    $region3: #{tpu_custom_call.1} parent=1 // loop_header
      %s18 = sphi 0, %s22
      %p19 = scmp.ge.s32.totalorder %s18, 4
      %s25 = sphi 0, %s37
      %s26 = sphi 0, %s33
      %s27 = sphi 0, %s25
      %s28 = sphi 0, %s26
      %s29 = sphi 0, %s27
      %s30 = sphi 0, %s28
      %s42 = sphi 0, %s44
      %s45 = sphi 0, %s42
      %s46 = sphi 0, %s45
      %s62 = sphi 0, %s46
      %s68 = sphi 0, %s70
      %s71 = sphi 0, %s68
      %s72 = sphi 0, %s71
      %s88 = sphi 0, %s72
      %s96 = sphi 0, %s98
      %s99 = sphi 0, %s96
      %s100 = sphi 0, %s99
      %s116 = sphi 0, %s100
      %s120 = sphi 0, %s120
      %s122 = sphi 0, %s120
      %s123 = sphi 0, %s122
      %s137 = sphi 0, %s123
      %s141 = sphi 0, %s141
      %s143 = sphi 0, %s141
      %s144 = sphi 0, %s143
      %s158 = sphi 0, %s144
      %s166 = sphi 0, %s168
      %s169 = sphi 0, %s166
      %s170 = sphi 0, %s169
      %s186 = sphi 0, %s170
    $region4: #{tpu_custom_call.1} parent=1 // loop_header_branch
      %21 = sbr.rel (%p19) target = $region8
    $region5: #{tpu_custom_call.1} parent=1 // loop_body
      %s23 = ssub.s32 %s18, 1
      %s24 = ssub.s32 %s18, 2
      %s31 = sadd.s32 1, %s26
      %p32 = scmp.ge.s32.totalorder %s31, 1
      %s33 = scalar_select %p32, 0, %s31
      %s34 = sadd.s32 1, %s25
      %s35 = scalar_select %p32, %s34, %s25
      %p36 = scmp.ge.s32.totalorder %s35, 2
      %s37 = scalar_select %p36, 0, %s35
      %s38 = ssub.s32 %s25, %s37
      %s39 = ssub.s32 %s26, %s33
      %s40 = sor.u32 %s38, %s39
      %p41 = scmp.eq.s32.totalorder %s40, 0
      %s43 = sadd.s32 %s42, 1
      %s44 = scalar_select %p41, %s42, %s43
      %p47 = pneg %p41
      %p48 = scmp.eq.s32.totalorder %s18, 1
      %p49 = por %p47, %p48
      %p50 = scmp.ne.s32.totalorder %s42, %s45
      %p51 = scmp.eq.s32.totalorder %s18, 0
      %p52 = por %p50, %p51
      %p53 = scmp.ne.s32.totalorder %s42, %s45
      %p54 = scmp.eq.s32.totalorder %s23, 1
      %p55 = por %p53, %p54
      %p56 = scmp.ne.s32.totalorder %s45, %s46
      %p57 = scmp.eq.s32.totalorder %s23, 0
      %p58 = por %p56, %p57
      %p59 = scmp.ne.s32.totalorder %s45, %s46
      %p60 = scmp.eq.s32.totalorder %s24, 1
      %p61 = por %p59, %p60
      %p63 = scmp.ne.s32.totalorder %s46, %s62
      %p64 = scmp.eq.s32.totalorder %s24, 0
      %p65 = por %p63, %p64
      %s66 = ssub.s32 %s26, %s33
      %p67 = scmp.eq.s32.totalorder %s66, 0
      %s69 = sadd.s32 %s68, 1
      %s70 = scalar_select %p67, %s68, %s69
      %p73 = pneg %p67
      %p74 = scmp.eq.s32.totalorder %s18, 1
      %p75 = por %p73, %p74
      %p76 = scmp.ne.s32.totalorder %s68, %s71
      %p77 = scmp.eq.s32.totalorder %s18, 0
      %p78 = por %p76, %p77
      %p79 = scmp.ne.s32.totalorder %s68, %s71
      %p80 = scmp.eq.s32.totalorder %s23, 1
      %p81 = por %p79, %p80
      %p82 = scmp.ne.s32.totalorder %s71, %s72
      %p83 = scmp.eq.s32.totalorder %s23, 0
      %p84 = por %p82, %p83
      %p85 = scmp.ne.s32.totalorder %s71, %s72
      %p86 = scmp.eq.s32.totalorder %s24, 1
      %p87 = por %p85, %p86
      %p89 = scmp.ne.s32.totalorder %s72, %s88
      %p90 = scmp.eq.s32.totalorder %s24, 0
      %p91 = por %p89, %p90
      %s92 = ssub.s32 %s25, %s37
      %s93 = ssub.s32 %s26, %s33
      %s94 = sor.u32 %s92, %s93
      %p95 = scmp.eq.s32.totalorder %s94, 0
      %s97 = sadd.s32 %s96, 1
      %s98 = scalar_select %p95, %s96, %s97
      %p101 = pneg %p95
      %p102 = scmp.eq.s32.totalorder %s18, 1
      %p103 = por %p101, %p102
      %p104 = scmp.ne.s32.totalorder %s96, %s99
      %p105 = scmp.eq.s32.totalorder %s18, 0
      %p106 = por %p104, %p105
      %p107 = scmp.ne.s32.totalorder %s96, %s99
      %p108 = scmp.eq.s32.totalorder %s23, 1
      %p109 = por %p107, %p108
      %p110 = scmp.ne.s32.totalorder %s99, %s100
      %p111 = scmp.eq.s32.totalorder %s23, 0
      %p112 = por %p110, %p111
      %p113 = scmp.ne.s32.totalorder %s99, %s100
      %p114 = scmp.eq.s32.totalorder %s24, 1
      %p115 = por %p113, %p114
      %p117 = scmp.ne.s32.totalorder %s100, %s116
      %p118 = scmp.eq.s32.totalorder %s24, 0
      %p119 = por %p117, %p118
      %s121 = sadd.s32 %s120, 1
      %p124 = scmp.eq.s32.totalorder %s18, 1
      %p125 = scmp.ne.s32.totalorder %s120, %s122
      %p126 = scmp.eq.s32.totalorder %s18, 0
      %p127 = por %p125, %p126
      %p128 = scmp.ne.s32.totalorder %s120, %s122
      %p129 = scmp.eq.s32.totalorder %s23, 1
      %p130 = por %p128, %p129
      %p131 = scmp.ne.s32.totalorder %s122, %s123
      %p132 = scmp.eq.s32.totalorder %s23, 0
      %p133 = por %p131, %p132
      %p134 = scmp.ne.s32.totalorder %s122, %s123
      %p135 = scmp.eq.s32.totalorder %s24, 1
      %p136 = por %p134, %p135
      %p138 = scmp.ne.s32.totalorder %s123, %s137
      %p139 = scmp.eq.s32.totalorder %s24, 0
      %p140 = por %p138, %p139
      %s142 = sadd.s32 %s141, 1
      %p145 = scmp.eq.s32.totalorder %s18, 1
      %p146 = scmp.ne.s32.totalorder %s141, %s143
      %p147 = scmp.eq.s32.totalorder %s18, 0
      %p148 = por %p146, %p147
      %p149 = scmp.ne.s32.totalorder %s141, %s143
      %p150 = scmp.eq.s32.totalorder %s23, 1
      %p151 = por %p149, %p150
      %p152 = scmp.ne.s32.totalorder %s143, %s144
      %p153 = scmp.eq.s32.totalorder %s23, 0
      %p154 = por %p152, %p153
      %p155 = scmp.ne.s32.totalorder %s143, %s144
      %p156 = scmp.eq.s32.totalorder %s24, 1
      %p157 = por %p155, %p156
      %p159 = scmp.ne.s32.totalorder %s144, %s158
      %p160 = scmp.eq.s32.totalorder %s24, 0
      %p161 = por %p159, %p160
      %s162 = ssub.s32 %s25, %s37
      %s163 = ssub.s32 %s26, %s33
      %s164 = sor.u32 %s162, %s163
      %p165 = scmp.eq.s32.totalorder %s164, 0
      %s167 = sadd.s32 %s166, 1
      %s168 = scalar_select %p165, %s166, %s167
      %p171 = pneg %p165
      %p172 = scmp.eq.s32.totalorder %s18, 1
      %p173 = por %p171, %p172
      %p174 = scmp.ne.s32.totalorder %s166, %s169
      %p175 = scmp.eq.s32.totalorder %s18, 0
      %p176 = por %p174, %p175
      %p177 = scmp.ne.s32.totalorder %s166, %s169
      %p178 = scmp.eq.s32.totalorder %s23, 1
      %p179 = por %p177, %p178
      %p180 = scmp.ne.s32.totalorder %s169, %s170
      %p181 = scmp.eq.s32.totalorder %s23, 0
      %p182 = por %p180, %p181
      %p183 = scmp.ne.s32.totalorder %s169, %s170
      %p184 = scmp.eq.s32.totalorder %s24, 1
      %p185 = por %p183, %p184
      %p187 = scmp.ne.s32.totalorder %s170, %s186
      %p188 = scmp.eq.s32.totalorder %s24, 0
      %p189 = por %p187, %p188
      %p190 = scmp.le.s32.totalorder 1, %s18
      %p191 = scmp.lt.s32.totalorder %s18, 3
      %p192 = pnand %p190, %p191
      %p193 = pneg %p192
      // Predicated region
      $region9: #{tpu_custom_call.1} parent=5 // pred_check
        _
      $region10: #{tpu_custom_call.1} parent=5 // pred_check_branch
        %195 = sbr.rel (%p192) target = $region12
      $region11: #{tpu_custom_call.1} parent=5 // pred_region
        %s196 = ssub.s32 %s18, 1
        // Predicated region
        $region13: #{tpu_custom_call.1} parent=11 // pred_check
          %p197 = pneg %p84
        $region14: #{tpu_custom_call.1} parent=11 // pred_check_branch
          %199 = sbr.rel (%p197) target = $region16
        $region15: #{tpu_custom_call.1} parent=11 // pred_region
          %s201 = ssub.s32 64, 64
          %202 = vsyncadd [#allocation6], %s201
          %s203 = smul.addr %s28, 64
          %s204 = scalar_lea.hbm %s1, %s203
          %s206 = sshll.u32 [#allocation5], 4
          %s207 = int_to_ptr.vmem [resolvable:$true] %s206
          %209 = dma.hbm_to_vmem [thread:$0]  %s204, 64, %s207, [#allocation6]
        $region16: #{tpu_custom_call.1} parent=11 // pred_fallthru
          _
        // Predicated region
        $region17: #{tpu_custom_call.1} parent=11 // pred_check
          %p210 = pneg %p133
        $region18: #{tpu_custom_call.1} parent=11 // pred_check_branch
          %212 = sbr.rel (%p210) target = $region20
        $region19: #{tpu_custom_call.1} parent=11 // pred_region
          _
        $region20: #{tpu_custom_call.1} parent=11 // pred_fallthru
          _
        // Predicated region
        $region21: #{tpu_custom_call.1} parent=11 // pred_check
          %p213 = pneg %p154
        $region22: #{tpu_custom_call.1} parent=11 // pred_check_branch
          %215 = sbr.rel (%p213) target = $region24
        $region23: #{tpu_custom_call.1} parent=11 // pred_region
          _
        $region24: #{tpu_custom_call.1} parent=11 // pred_fallthru
          _
      $region12: #{tpu_custom_call.1} parent=5 // pred_fallthru
        _
      %p216 = scmp.lt.s32.totalorder %s18, 2
      // Predicated region
      $region25: #{tpu_custom_call.1} parent=5 // pred_check
        %p217 = pneg %p216
      $region26: #{tpu_custom_call.1} parent=5 // pred_check_branch
        %219 = sbr.rel (%p217) target = $region28
      $region27: #{tpu_custom_call.1} parent=5 // pred_region
        // Predicated region
        $region29: #{tpu_custom_call.1} parent=27 // pred_check
          %p220 = pneg %p52
        $region30: #{tpu_custom_call.1} parent=27 // pred_check_branch
          %222 = sbr.rel (%p220) target = $region32
        $region31: #{tpu_custom_call.1} parent=27 // pred_region
          %s223 = sand.u32 %s18, 1
          %s224 = scalar_lea.sflag [#allocation3], %s223
          %s225 = sand.u32 %s42, 1
          %s226 = smul.addr %s225, 4
          %s227 = scalar_lea.vmem [#allocation2], %s226
          %s229 = ssub.s32 64, 64
          %230 = vsyncadd %s224, %s229
          %s231 = sadd.s32 %s26, %s25
          %s232 = smul.addr %s231, 64
          %s233 = scalar_lea.hbm %s0, %s232
          %s235 = sshll.u32 %s227, 4
          %s236 = int_to_ptr.vmem [resolvable:$true] %s235
          %238 = dma.hbm_to_vmem [thread:$0]  %s233, 64, %s236, %s224
        $region32: #{tpu_custom_call.1} parent=27 // pred_fallthru
          _
        // Predicated region
        $region33: #{tpu_custom_call.1} parent=27 // pred_check
          %p239 = pneg %p106
        $region34: #{tpu_custom_call.1} parent=27 // pred_check_branch
          %241 = sbr.rel (%p239) target = $region36
        $region35: #{tpu_custom_call.1} parent=27 // pred_region
          %s242 = sand.u32 %s18, 1
          %s243 = scalar_lea.sflag [#allocation3], %s242
          %s244 = sand.u32 %s96, 1
          %s245 = smul.addr %s244, 4
          %s246 = scalar_lea.vmem [#allocation7], %s245
          %s248 = ssub.s32 64, 64
          %249 = vsyncadd %s243, %s248
          %s250 = sadd.s32 %s26, %s25
          %s251 = smul.addr %s250, 64
          %s252 = scalar_lea.hbm %s2, %s251
          %s254 = sshll.u32 %s246, 4
          %s255 = int_to_ptr.vmem [resolvable:$true] %s254
          %257 = dma.hbm_to_vmem [thread:$0]  %s252, 64, %s255, %s243
        $region36: #{tpu_custom_call.1} parent=27 // pred_fallthru
          _
      $region28: #{tpu_custom_call.1} parent=5 // pred_fallthru
        _
      %p258 = scmp.le.s32.totalorder 1, %s18
      %p259 = scmp.lt.s32.totalorder %s18, 3
      %p260 = pnand %p258, %p259
      %p261 = pneg %p260
      // Predicated region
      $region37: #{tpu_custom_call.1} parent=5 // pred_check
        _
      $region38: #{tpu_custom_call.1} parent=5 // pred_check_branch
        %263 = sbr.rel (%p260) target = $region40
      $region39: #{tpu_custom_call.1} parent=5 // pred_region
        %s264 = ssub.s32 %s18, 1
        %s265 = sand.u32 %s23, 1
        %s266 = scalar_lea.sflag [#allocation3], %s265
        %s267 = sand.u32 %s45, 1
        %s268 = smul.addr %s267, 4
        %s269 = scalar_lea.vmem [#allocation2], %s268
        // Predicated region
        $region41: #{tpu_custom_call.1} parent=39 // pred_check
          %p270 = pneg %p58
        $region42: #{tpu_custom_call.1} parent=39 // pred_check_branch
          %272 = sbr.rel (%p270) target = $region44
        $region43: #{tpu_custom_call.1} parent=39 // pred_region
          %273 = dma.done %s266, 64
        $region44: #{tpu_custom_call.1} parent=39 // pred_fallthru
          _
        // Predicated region
        $region45: #{tpu_custom_call.1} parent=39 // pred_check
          %p274 = pneg %p84
        $region46: #{tpu_custom_call.1} parent=39 // pred_check_branch
          %276 = sbr.rel (%p274) target = $region48
        $region47: #{tpu_custom_call.1} parent=39 // pred_region
          %277 = dma.done [#allocation6], 64
        $region48: #{tpu_custom_call.1} parent=39 // pred_fallthru
          _
        %s278 = sand.u32 %s23, 1
        %s279 = scalar_lea.sflag [#allocation3], %s278
        %s280 = sand.u32 %s99, 1
        %s281 = smul.addr %s280, 4
        %s282 = scalar_lea.vmem [#allocation7], %s281
        // Predicated region
        $region49: #{tpu_custom_call.1} parent=39 // pred_check
          %p283 = pneg %p112
        $region50: #{tpu_custom_call.1} parent=39 // pred_check_branch
          %285 = sbr.rel (%p283) target = $region52
        $region51: #{tpu_custom_call.1} parent=39 // pred_region
          %286 = dma.done %s279, 64
        $region52: #{tpu_custom_call.1} parent=39 // pred_fallthru
          _
        %s287 = sand.u32 %s23, 1
        %s288 = scalar_lea.sflag [#allocation3], %s287
        %s289 = sand.u32 %s45, 1
        %s290 = smul.addr %s289, 4
        %s291 = scalar_lea.vmem [#allocation2], %s290
        %p292 = pneg %p58
        %p293 = pneg %p55
        %p294 = pneg %p84
        %p295 = pneg %p81
        %s296 = sand.u32 %s23, 1
        %s297 = scalar_lea.sflag [#allocation3], %s296
        %s298 = sand.u32 %s99, 1
        %s299 = smul.addr %s298, 4
        %s300 = scalar_lea.vmem [#allocation7], %s299
        %p301 = pneg %p112
        %p302 = pneg %p109
        %p303 = pneg %p133
        %p304 = pneg %p130
        %p305 = pneg %p154
        %p306 = pneg %p151
        %p307 = pneg %p182
        %p308 = pneg %p179
        %s309 = sand.u32 %s169, 1
        %s310 = scalar_lea.sflag [#allocation4], %s309
        %s311 = sand.u32 %s169, 1
        %s312 = smul.addr %s311, 4
        %s313 = scalar_lea.vmem [#allocation8], %s312
        %v314 = vld [vmem:[%s269] sm:$0xf]
        %v315 = vunpack.c.l.bf16 %v314
        %v316 = vld [vmem:[#allocation5] sm:$0xf]
        %v317 = vunpack.c.l.bf16 %v316
        %v318 = vadd.f32 %v315, %v317
        %v319 = vld [vmem:[%s282] sm:$0xf]
        %v320 = vunpack.c.l.bf16 %v319
        %v321 = vadd.f32 %v318, %v320
        %vm322 = vcmask 261120
        %v323 = vsel %vm322, %v321, 0.0
        %324 = vadd.xlane.f32.xlu0 %v323
        %v325 = vpop.xlane.xlu0 %324
        %v326 = vrcp.pop 32.0
        %v327 = vmul.f32 %v325, %v326
        %v328 = vsub.f32 %v321, %v327
        %v329 = vmul.f32 %v328, %v328
        %v330 = vsel %vm322, %v329, 0.0
        %331 = vadd.xlane.f32.xlu0 %v330
        %v332 = vpop.xlane.xlu0 %331
        %v333 = vmul.f32 %v332, %v326
        %v334 = vadd.f32 %v333, 1e-12
        %v335 = vrsqrt.pop %v334
        %v336 = vmul.f32 %v328, %v335
        %v337 = vld [vmem:[%s3] sm:$0x1]
        %v338 = vunpack.c.l.bf16 %v337
        %v339 = vlaneseq
        %v340 = vshrl.u32 %v339, 7
        %v341 = vsub.s32 0, %v340
        %v342 = vrot.slane %v338, %v341
        %v343 = vmul.f32 %v336, %v342
        %v344 = vld [vmem:[%s4] sm:$0x1]
        %v345 = vunpack.c.l.bf16 %v344
        %v346 = vlaneseq
        %v347 = vshrl.u32 %v346, 7
        %v348 = vsub.s32 0, %v347
        %v349 = vrot.slane %v345, %v348
        %v350 = vadd.f32 %v343, %v349
        %v351 = vpack.c.bf16 %v350, %v350
        %vm352 = vcmask 257024
        %353 = vst.msk [vmem:[%s313] sm:$0xf] %vm352, %v351
        %s354 = sand.u32 %s169, 1
        %s355 = scalar_lea.sflag [#allocation4], %s354
        %s356 = sand.u32 %s169, 1
        %s357 = smul.addr %s356, 4
        %s358 = scalar_lea.vmem [#allocation8], %s357
        // Predicated region
        $region53: #{tpu_custom_call.1} parent=39 // pred_check
          %p359 = pneg %p179
        $region54: #{tpu_custom_call.1} parent=39 // pred_check_branch
          %361 = sbr.rel (%p359) target = $region56
        $region55: #{tpu_custom_call.1} parent=39 // pred_region
          %s363 = ssub.s32 64, 64
          %364 = vsyncadd %s355, %s363
          %s365 = sadd.s32 %s28, %s27
          %s366 = smul.addr %s365, 64
          %s367 = scalar_lea.hbm %s5, %s366
          %s369 = sshll.u32 %s358, 4
          %s370 = int_to_ptr.vmem [resolvable:$true] %s369
          %372 = dma.vmem_to_hbm [thread:$0]  %s370, 64, %s367, %s355
        $region56: #{tpu_custom_call.1} parent=39 // pred_fallthru
          _
      $region40: #{tpu_custom_call.1} parent=5 // pred_fallthru
        _
      %p373 = scmp.le.s32.totalorder 2, %s18
      // Predicated region
      $region57: #{tpu_custom_call.1} parent=5 // pred_check
        %p374 = pneg %p373
      $region58: #{tpu_custom_call.1} parent=5 // pred_check_branch
        %376 = sbr.rel (%p374) target = $region60
      $region59: #{tpu_custom_call.1} parent=5 // pred_region
        %s377 = ssub.s32 %s18, 2
        // Predicated region
        $region61: #{tpu_custom_call.1} parent=59 // pred_check
          %p378 = pneg %p185
        $region62: #{tpu_custom_call.1} parent=59 // pred_check_branch
          %380 = sbr.rel (%p378) target = $region64
        $region63: #{tpu_custom_call.1} parent=59 // pred_region
          %s381 = sand.u32 %s170, 1
          %s382 = scalar_lea.sflag [#allocation4], %s381
          %s383 = sand.u32 %s170, 1
          %s384 = smul.addr %s383, 4
          %s385 = scalar_lea.vmem [#allocation8], %s384
          %386 = dma.done %s382, 64
        $region64: #{tpu_custom_call.1} parent=59 // pred_fallthru
          _
      $region60: #{tpu_custom_call.1} parent=5 // pred_fallthru
        _
    $region6: #{tpu_custom_call.1} parent=1 // loop_footer
      %s22 = sadd.s32 1, %s18
    $region7: #{tpu_custom_call.1} parent=1 // loop_footer_branch
      %17 = sbr.rel target = $region3
    $region8: #{tpu_custom_call.1} parent=1 // loop_exit
      _
    %387 = vsyncpa [#allocation3], 1
    %s388 = scalar_lea.sflag [#allocation3], 1
    %389 = vsyncpa %s388, 1
    %390 = vsyncpa [#allocation6], 1
    %391 = vsyncpa [#allocation4], 1
    %s392 = scalar_lea.sflag [#allocation4], 1
    %393 = vsyncpa %s392, 1

</llo_original>
